<compile_context>
chip_gen: v7x
topology: tpu7x:2x2x1
jax: 0.10.0
libtpu: 0.0.40
codegen_flags: <defaults>
</compile_context>

<pallas_src>
import jax
import jax.numpy as jnp
from jax.experimental import pallas as pl
from jax.experimental.pallas import tpu as pltpu

EPS = 1e-5


# --------------------------------------------------------------------------- #
# Pallas kernel: 3x3 "same" convolution (no bias) for one (batch, row-band)    #
# --------------------------------------------------------------------------- #
def _conv3x3_kernel(xm_ref, xh_ref, w_ref, o_ref):
    """One grid step = one batch element x one band of TH output rows.

    xm_ref: (1, TH, W+2, C)   padded-input rows [h*TH, h*TH + TH)
    xh_ref: (1, 2,  W+2, C)   2-row halo: padded rows [h*TH + TH, h*TH + TH + 2)
    w_ref : (9*C, Cout) bf16  weights, row index = (dy*3 + dx)*C + ci
    o_ref : (1, TH*W, Cout)   f32 raw conv output, row-major over (row, col)
    """
    _, TH, Wp, C = xm_ref.shape
    W = Wp - 2

    # Band + halo -> (TH+2, W+2, C); cast activations to bf16 for the MXU.
    x = jnp.concatenate([xm_ref[0], xh_ref[0]], axis=0).astype(jnp.bfloat16)

    # K-fuse the 9 taps: build a (TH*W, 9*C) patch matrix and run a single
    # bf16 x bf16 -> f32 MXU matmul instead of 9 under-filled K=C matmuls.
    parts = []
    for dy in range(3):
        rows = x[dy:dy + TH]                      # (TH, W+2, C)
        for dx in range(3):
            parts.append(rows[:, dx:dx + W, :])   # (TH, W, C)
    patches = jnp.concatenate(parts, axis=-1)     # (TH, W, 9*C)
    patches = patches.reshape(TH * W, 9 * C)      # last dim preserved

    o_ref[0] = jnp.dot(patches, w_ref[...],
                       preferred_element_type=jnp.float32)


def _pick_band(H):
    """Row-band height: divides H, even (halo block is 2 rows), prefer larger."""
    for th in (32, 16, 8):
        if H % th == 0:
            return th
    if H % 2 == 0:
        return H
    raise NotImplementedError("odd image heights not supported")


def conv3x3_same(x_nhwc, w_tap):
    """3x3 stride-1 'same' conv, no bias. w_tap: (9*Cin, Cout) bf16."""
    N, H, W, C = x_nhwc.shape
    Cout = w_tap.shape[1]
    TH = _pick_band(H)
    half = TH // 2

    xpad = jnp.pad(x_nhwc.astype(jnp.float32), ((0, 0), (1, 1), (1, 1), (0, 0)))
    Wp = W + 2
    grid = (N, H // TH)

    band_spec = pl.BlockSpec((1, TH, Wp, C), lambda n, h: (n, h, 0, 0))
    halo_spec = pl.BlockSpec((1, 2, Wp, C), lambda n, h: (n, (h + 1) * half, 0, 0))
    w_spec = pl.BlockSpec((9 * C, Cout), lambda n, h: (0, 0))
    out_spec = pl.BlockSpec((1, TH * W, Cout), lambda n, h: (n, h, 0))

    # Cost estimate + a VMEM limit sized to the actual tile footprint.
    flops = 2 * N * H * W * 9 * C * Cout
    bytes_accessed = xpad.size * 4 + 9 * C * Cout * 2 + N * H * W * Cout * 4

    band_bytes = TH * Wp * C * 4
    halo_bytes = 2 * Wp * C * 4
    w_bytes = 9 * C * Cout * 2
    out_bytes = TH * W * Cout * 4
    patch_bytes = TH * W * 9 * C * 2
    io_bytes = 2 * (band_bytes + halo_bytes + w_bytes + out_bytes)  # double-buffered
    vmem_limit = int(min(max(io_bytes + 3 * patch_bytes + 2 * out_bytes + (2 << 20),
                             16 << 20), 64 << 20))

    out = pl.pallas_call(
        _conv3x3_kernel,
        out_shape=jax.ShapeDtypeStruct((N, H * W, Cout), jnp.float32),
        grid=grid,
        in_specs=[band_spec, halo_spec, w_spec],
        out_specs=out_spec,
        compiler_params=pltpu.CompilerParams(
            dimension_semantics=("parallel", "parallel"),
            vmem_limit_bytes=vmem_limit),
        cost_estimate=pl.CostEstimate(flops=flops, transcendentals=0,
                                      bytes_accessed=bytes_accessed),
    )(xpad, xpad, w_tap)

    return out.reshape(N, H, W, Cout)


# --------------------------------------------------------------------------- #
# JAX glue (global batch statistics / elementwise phases between conv calls)   #
# --------------------------------------------------------------------------- #
def _batch_norm_train(y, gamma, beta):
    """Train-mode BatchNorm: biased batch variance, two-pass (no cancellation)."""
    m = jnp.mean(y, axis=(0, 1, 2), keepdims=True)
    v = jnp.mean(jnp.square(y - m), axis=(0, 1, 2), keepdims=True)
    scale = gamma.reshape(1, 1, 1, -1) * jax.lax.rsqrt(v + EPS)
    return (y - m) * scale + beta.reshape(1, 1, 1, -1)


def residual_block(x_nchw, params):
    """x_nchw: (N, C, H, W) float32. Returns (N, C, H, W) float32."""
    w1, g1, b1, a1, w2, g2, b2 = params          # conv weights in torch OIHW
    N, C, H, W = x_nchw.shape
    x = jnp.transpose(x_nchw, (0, 2, 3, 1)).astype(jnp.float32)     # NHWC

    # OIHW -> (kh, kw, Cin, Cout) -> (9*Cin, Cout), bf16 for the MXU.
    w1k = jnp.transpose(w1, (2, 3, 1, 0)).reshape(9 * C, C).astype(jnp.bfloat16)
    w2k = jnp.transpose(w2, (2, 3, 1, 0)).reshape(9 * C, C).astype(jnp.bfloat16)

    y = conv3x3_same(x, w1k)                     # Pallas conv #1
    y = _batch_norm_train(y, g1, b1)
    y = jnp.where(y > 0, y, a1[0] * y)           # PReLU, single shared slope
    z = conv3x3_same(y, w2k)                     # Pallas conv #2
    z = _batch_norm_train(z, g2, b2)
    return jnp.transpose(z + x, (0, 3, 1, 2))


# --------------------------------------------------------------------------- #
# Pure-JAX reference (same semantics & matmul precision) for the sanity check  #
# --------------------------------------------------------------------------- #
def reference(x_nchw, params):
    w1, g1, b1, a1, w2, g2, b2 = params
    x = jnp.transpose(x_nchw, (0, 2, 3, 1)).astype(jnp.float32)

    def conv(x, w_oihw):
        w_hwio = jnp.transpose(w_oihw, (2, 3, 1, 0))
        return jax.lax.conv_general_dilated(
            x.astype(jnp.bfloat16), w_hwio.astype(jnp.bfloat16),
            (1, 1), 'SAME',
            dimension_numbers=('NHWC', 'HWIO', 'NHWC'),
            preferred_element_type=jnp.float32)

    y = _batch_norm_train(conv(x, w1), g1, b1)
    y = jnp.where(y > 0, y, a1[0] * y)
    z = _batch_norm_train(conv(y, w2), g2, b2)
    return jnp.transpose(z + x, (0, 3, 1, 2))


def init_params(key, C):
    ks = jax.random.split(key, 7)
    fan_in = C * 9
    bound = 1.0 / (fan_in ** 0.5)   # ~torch kaiming-uniform bound for conv weights
    w1 = jax.random.uniform(ks[0], (C, C, 3, 3), jnp.float32, -bound, bound)
    w2 = jax.random.uniform(ks[1], (C, C, 3, 3), jnp.float32, -bound, bound)
    g1 = 1.0 + 0.1 * jax.random.normal(ks[2], (C,), jnp.float32)
    b1 = 0.1 * jax.random.normal(ks[3], (C,), jnp.float32)
    g2 = 1.0 + 0.1 * jax.random.normal(ks[4], (C,), jnp.float32)
    b2 = 0.1 * jax.random.normal(ks[5], (C,), jnp.float32)
    a1 = jnp.array([0.25], jnp.float32)          # nn.PReLU() default init
    return (w1, g1, b1, a1, w2, g2, b2)


if __name__ == "__main__":
    key = jax.random.PRNGKey(0)
    k_x, k_p = jax.random.split(key)

    N, C, H, W = 2, 8, 16, 16
    x = jax.random.normal(k_x, (N, C, H, W), jnp.float32)
    params = init_params(k_p, C)

    out = jax.jit(residual_block)(x, params)
    out = jax.block_until_ready(out)

    ref = reference(x, params)
    assert out.shape == (N, C, H, W)
    max_err = float(jnp.max(jnp.abs(out - ref)))
    assert jnp.allclose(out, ref, rtol=5e-3, atol=5e-3), \
        f"mismatch vs JAX reference (max abs err {max_err})"

    print("KERNEL_OK")
</pallas_src>

<mosaic_0001>
module attributes {stable_mosaic.version = 11 : i64} {
  func.func @_conv3x3_kernel(%arg0: i32, %arg1: i32, %arg2: memref<1x16x18x8xf32, #tpu.memory_space<vmem>>, %arg3: memref<1x2x18x8xf32, #tpu.memory_space<vmem>>, %arg4: memref<72x8xbf16, #tpu.memory_space<vmem>>, %arg5: memref<1x256x8xf32, #tpu.memory_space<vmem>>) attributes {dimension_semantics = [#tpu.dimension_semantics<parallel>, #tpu.dimension_semantics<parallel>], iteration_bounds = array<i64: 2, 1>, scalar_prefetch = 0 : i64, scratch_operands = 0 : i64, tpu.core_type = #tpu.core_type<tc>, window_params = [{transform_indices = @transform_0, window_bounds = array<i64: 1, 16, 18, 8>}, {transform_indices = @transform_1, window_bounds = array<i64: 1, 2, 18, 8>}, {pipeline_mode = #tpu.pipeline_mode<synchronous>, transform_indices = @transform_2, window_bounds = array<i64: 72, 8>}, {transform_indices = @transform_3, window_bounds = array<i64: 1, 256, 8>}]} {
    %c0 = arith.constant 0 : index
    %c0_0 = arith.constant 0 : index
    %c0_1 = arith.constant 0 : index
    %c0_2 = arith.constant 0 : index
    %0 = vector.load %arg2[%c0, %c0_0, %c0_1, %c0_2] : memref<1x16x18x8xf32, #tpu.memory_space<vmem>>, vector<1x16x18x8xf32>
    %1 = vector.shape_cast %0 : vector<1x16x18x8xf32> to vector<16x18x8xf32>
    %c0_3 = arith.constant 0 : index
    %c0_4 = arith.constant 0 : index
    %c0_5 = arith.constant 0 : index
    %c0_6 = arith.constant 0 : index
    %2 = vector.load %arg3[%c0_3, %c0_4, %c0_5, %c0_6] : memref<1x2x18x8xf32, #tpu.memory_space<vmem>>, vector<1x2x18x8xf32>
    %3 = vector.shape_cast %2 : vector<1x2x18x8xf32> to vector<2x18x8xf32>
    %4 = tpu.concatenate %1, %3 in 0 : vector<16x18x8xf32>, vector<2x18x8xf32> -> vector<18x18x8xf32>
    %5 = arith.truncf %4 : vector<18x18x8xf32> to vector<18x18x8xbf16>
    %6 = vector.extract_strided_slice %5 {offsets = [0, 0, 0], sizes = [16, 18, 8], strides = [1, 1, 1]} : vector<18x18x8xbf16> to vector<16x18x8xbf16>
    %7 = vector.extract_strided_slice %6 {offsets = [0, 0, 0], sizes = [16, 16, 8], strides = [1, 1, 1]} : vector<16x18x8xbf16> to vector<16x16x8xbf16>
    %8 = vector.extract_strided_slice %6 {offsets = [0, 1, 0], sizes = [16, 16, 8], strides = [1, 1, 1]} : vector<16x18x8xbf16> to vector<16x16x8xbf16>
    %9 = vector.extract_strided_slice %6 {offsets = [0, 2, 0], sizes = [16, 16, 8], strides = [1, 1, 1]} : vector<16x18x8xbf16> to vector<16x16x8xbf16>
    %10 = vector.extract_strided_slice %5 {offsets = [1, 0, 0], sizes = [16, 18, 8], strides = [1, 1, 1]} : vector<18x18x8xbf16> to vector<16x18x8xbf16>
    %11 = vector.extract_strided_slice %10 {offsets = [0, 0, 0], sizes = [16, 16, 8], strides = [1, 1, 1]} : vector<16x18x8xbf16> to vector<16x16x8xbf16>
    %12 = vector.extract_strided_slice %10 {offsets = [0, 1, 0], sizes = [16, 16, 8], strides = [1, 1, 1]} : vector<16x18x8xbf16> to vector<16x16x8xbf16>
    %13 = vector.extract_strided_slice %10 {offsets = [0, 2, 0], sizes = [16, 16, 8], strides = [1, 1, 1]} : vector<16x18x8xbf16> to vector<16x16x8xbf16>
    %14 = vector.extract_strided_slice %5 {offsets = [2, 0, 0], sizes = [16, 18, 8], strides = [1, 1, 1]} : vector<18x18x8xbf16> to vector<16x18x8xbf16>
    %15 = vector.extract_strided_slice %14 {offsets = [0, 0, 0], sizes = [16, 16, 8], strides = [1, 1, 1]} : vector<16x18x8xbf16> to vector<16x16x8xbf16>
    %16 = vector.extract_strided_slice %14 {offsets = [0, 1, 0], sizes = [16, 16, 8], strides = [1, 1, 1]} : vector<16x18x8xbf16> to vector<16x16x8xbf16>
    %17 = vector.extract_strided_slice %14 {offsets = [0, 2, 0], sizes = [16, 16, 8], strides = [1, 1, 1]} : vector<16x18x8xbf16> to vector<16x16x8xbf16>
    %18 = tpu.concatenate %7, %8, %9, %11, %12, %13, %15, %16, %17 in 2 : vector<16x16x8xbf16>, vector<16x16x8xbf16>, vector<16x16x8xbf16>, vector<16x16x8xbf16>, vector<16x16x8xbf16>, vector<16x16x8xbf16>, vector<16x16x8xbf16>, vector<16x16x8xbf16>, vector<16x16x8xbf16> -> vector<16x16x72xbf16>
    %19 = vector.shape_cast %18 : vector<16x16x72xbf16> to vector<256x72xbf16>
    %c0_7 = arith.constant 0 : index
    %c0_8 = arith.constant 0 : index
    %20 = vector.load %arg4[%c0_7, %c0_8] : memref<72x8xbf16, #tpu.memory_space<vmem>>, vector<72x8xbf16>
    %cst = arith.constant dense<0.000000e+00> : vector<256x8xf32>
    %21 = tpu.matmul %19, %20, %cst {dimension_numbers = #tpu.dot_dimension_numbers<[1], [0], [0], [1], [0, 0, 1, 1], [], []>} : vector<256x72xbf16>, vector<72x8xbf16>, vector<256x8xf32> -> vector<256x8xf32>
    %c0_9 = arith.constant 0 : index
    %c0_10 = arith.constant 0 : index
    %c0_11 = arith.constant 0 : index
    %22 = vector.load %arg5[%c0_9, %c0_10, %c0_11] : memref<1x256x8xf32, #tpu.memory_space<vmem>>, vector<1x256x8xf32>
    %23 = vector.shape_cast %22 : vector<1x256x8xf32> to vector<256x8xf32>
    %24 = vector.shape_cast %21 : vector<256x8xf32> to vector<1x256x8xf32>
    tpu.vector_store %arg5[%c0_9, %c0_10, %c0_11], %24 {strides = array<i32>} : memref<1x256x8xf32, #tpu.memory_space<vmem>>, vector<1x256x8xf32>,
    return
  }
  func.func @transform_0(%arg0: i32, %arg1: i32) -> (i32, i32, i32, i32) {
    %c0_i32 = arith.constant 0 : i32
    %c0_i32_0 = arith.constant 0 : i32
    %c0_i32_1 = arith.constant 0 : i32
    return %arg0, %arg1, %c0_i32, %c0_i32_0 : i32, i32, i32, i32
  }
  func.func @transform_1(%arg0: i32, %arg1: i32) -> (i32, i32, i32, i32) {
    %c1_i32 = arith.constant 1 : i32
    %0 = arith.addi %arg1, %c1_i32 : i32
    %c8_i32 = arith.constant 8 : i32
    %1 = arith.muli %0, %c8_i32 : i32
    %c0_i32 = arith.constant 0 : i32
    %c0_i32_0 = arith.constant 0 : i32
    %c0_i32_1 = arith.constant 0 : i32
    return %arg0, %1, %c0_i32, %c0_i32_0 : i32, i32, i32, i32
  }
  func.func @transform_2(%arg0: i32, %arg1: i32) -> (i32, i32) {
    %c0_i32 = arith.constant 0 : i32
    %c0_i32_0 = arith.constant 0 : i32
    %c0_i32_1 = arith.constant 0 : i32
    return %c0_i32, %c0_i32_0 : i32, i32
  }
  func.func @transform_3(%arg0: i32, %arg1: i32) -> (i32, i32, i32) {
    %c0_i32 = arith.constant 0 : i32
    %c0_i32_0 = arith.constant 0 : i32
    return %arg0, %arg1, %c0_i32 : i32, i32, i32
  }
}

</mosaic_0001>

<llo_original>
// kernel: residual_block.2
$region0: #{residual_block.2}
  #allocation0 [shape = 'u32[]', space=smem, size = 0x4, offset = 0x4, fixed_abs, tag = 'smem constant byte address 0x4 - core index']
  #allocation1 [shape = 'u32[144,128]{1,0:T(1,128)}', space=vmem, size = 0x12000, scoped, tag = 'internal scratch']
  %s0 = inlined_call_operand.vmem [shape: f32[2,18,18,8], index: 0, kind: input, shape index: {}, may-alias: {0,1}]
  %s1 = inlined_call_operand.vmem [shape: f32[2,18,18,8], index: 1, kind: input, shape index: {}, may-alias: {0,1}]
  %s2 = inlined_call_operand.vmem [shape: bf16[72,8], index: 2, kind: input, shape index: {}]
  %s3 = inlined_call_operand.vmem [shape: f32[2,256,8], index: 3, kind: output, shape index: {}]
  %s4 = sld [smem:[#allocation0]]
  $region45: #{residual_block.2} parent=0
    _
  %s6 = ssub.s32 1, %s4
  %s7 = scalar_select 0, %s6, %s4
  loop: start=0, step=1, limit=4
  $region2: #{residual_block.2} parent=0 // loop_pre_header
    _
  $region3: #{residual_block.2} parent=0 // loop_header
    %s9 = sphi 0, %s13
    %p10 = scmp.ge.s32.totalorder %s9, 4
    %s16 = sphi 0, %s28
    %s17 = sphi 0, %s24
    %s18 = sphi 0, %s16
    %s19 = sphi 0, %s17
    %s20 = sphi 0, %s18
    %s21 = sphi 0, %s19
    %s33 = sphi 0, %s35
    %s36 = sphi 0, %s33
    %s37 = sphi 0, %s36
    %s53 = sphi 0, %s37
    %s65 = sphi 0, %s67
    %s68 = sphi 0, %s65
    %s69 = sphi 0, %s68
    %s85 = sphi 0, %s69
    %s89 = sphi 0, %s89
    %s91 = sphi 0, %s89
    %s92 = sphi 0, %s91
    %s106 = sphi 0, %s92
    %s114 = sphi 0, %s116
    %s117 = sphi 0, %s114
    %s118 = sphi 0, %s117
    %s134 = sphi 0, %s118
  $region4: #{residual_block.2} parent=0 // loop_header_branch
    %12 = sbr.rel (%p10) target = $region8
  $region5: #{residual_block.2} parent=0 // loop_body
    %s14 = ssub.s32 %s9, 1
    %s15 = ssub.s32 %s9, 2
    %s22 = sadd.s32 1, %s17
    %p23 = scmp.ge.s32.totalorder %s22, 1
    %s24 = scalar_select %p23, 0, %s22
    %s25 = sadd.s32 1, %s16
    %s26 = scalar_select %p23, %s25, %s16
    %p27 = scmp.ge.s32.totalorder %s26, 2
    %s28 = scalar_select %p27, 0, %s26
    %s29 = ssub.s32 %s16, %s28
    %s30 = ssub.s32 %s17, %s24
    %s31 = sor.u32 %s29, %s30
    %p32 = scmp.eq.s32.totalorder %s31, 0
    %s34 = sadd.s32 %s33, 1
    %s35 = scalar_select %p32, %s33, %s34
    %p38 = pneg %p32
    %p39 = scmp.eq.s32.totalorder %s9, 1
    %p40 = por %p38, %p39
    %p41 = scmp.ne.s32.totalorder %s33, %s36
    %p42 = scmp.eq.s32.totalorder %s9, 0
    %p43 = por %p41, %p42
    %p44 = scmp.ne.s32.totalorder %s33, %s36
    %p45 = scmp.eq.s32.totalorder %s14, 1
    %p46 = por %p44, %p45
    %p47 = scmp.ne.s32.totalorder %s36, %s37
    %p48 = scmp.eq.s32.totalorder %s14, 0
    %p49 = por %p47, %p48
    %p50 = scmp.ne.s32.totalorder %s36, %s37
    %p51 = scmp.eq.s32.totalorder %s15, 1
    %p52 = por %p50, %p51
    %p54 = scmp.ne.s32.totalorder %s37, %s53
    %p55 = scmp.eq.s32.totalorder %s15, 0
    %p56 = por %p54, %p55
    %s57 = sadd.s32 %s17, 1
    %s58 = smul.u32 %s57, 8
    %s59 = sadd.s32 %s24, 1
    %s60 = smul.u32 %s59, 8
    %s61 = ssub.s32 %s16, %s28
    %s62 = ssub.s32 %s58, %s60
    %s63 = sor.u32 %s61, %s62
    %p64 = scmp.eq.s32.totalorder %s63, 0
    %s66 = sadd.s32 %s65, 1
    %s67 = scalar_select %p64, %s65, %s66
    %p70 = pneg %p64
    %p71 = scmp.eq.s32.totalorder %s9, 1
    %p72 = por %p70, %p71
    %p73 = scmp.ne.s32.totalorder %s65, %s68
    %p74 = scmp.eq.s32.totalorder %s9, 0
    %p75 = por %p73, %p74
    %p76 = scmp.ne.s32.totalorder %s65, %s68
    %p77 = scmp.eq.s32.totalorder %s14, 1
    %p78 = por %p76, %p77
    %p79 = scmp.ne.s32.totalorder %s68, %s69
    %p80 = scmp.eq.s32.totalorder %s14, 0
    %p81 = por %p79, %p80
    %p82 = scmp.ne.s32.totalorder %s68, %s69
    %p83 = scmp.eq.s32.totalorder %s15, 1
    %p84 = por %p82, %p83
    %p86 = scmp.ne.s32.totalorder %s69, %s85
    %p87 = scmp.eq.s32.totalorder %s15, 0
    %p88 = por %p86, %p87
    %s90 = sadd.s32 %s89, 1
    %p93 = scmp.eq.s32.totalorder %s9, 1
    %p94 = scmp.ne.s32.totalorder %s89, %s91
    %p95 = scmp.eq.s32.totalorder %s9, 0
    %p96 = por %p94, %p95
    %p97 = scmp.ne.s32.totalorder %s89, %s91
    %p98 = scmp.eq.s32.totalorder %s14, 1
    %p99 = por %p97, %p98
    %p100 = scmp.ne.s32.totalorder %s91, %s92
    %p101 = scmp.eq.s32.totalorder %s14, 0
    %p102 = por %p100, %p101
    %p103 = scmp.ne.s32.totalorder %s91, %s92
    %p104 = scmp.eq.s32.totalorder %s15, 1
    %p105 = por %p103, %p104
    %p107 = scmp.ne.s32.totalorder %s92, %s106
    %p108 = scmp.eq.s32.totalorder %s15, 0
    %p109 = por %p107, %p108
    %s110 = ssub.s32 %s16, %s28
    %s111 = ssub.s32 %s17, %s24
    %s112 = sor.u32 %s110, %s111
    %p113 = scmp.eq.s32.totalorder %s112, 0
    %s115 = sadd.s32 %s114, 1
    %s116 = scalar_select %p113, %s114, %s115
    %p119 = pneg %p113
    %p120 = scmp.eq.s32.totalorder %s9, 1
    %p121 = por %p119, %p120
    %p122 = scmp.ne.s32.totalorder %s114, %s117
    %p123 = scmp.eq.s32.totalorder %s9, 0
    %p124 = por %p122, %p123
    %p125 = scmp.ne.s32.totalorder %s114, %s117
    %p126 = scmp.eq.s32.totalorder %s14, 1
    %p127 = por %p125, %p126
    %p128 = scmp.ne.s32.totalorder %s117, %s118
    %p129 = scmp.eq.s32.totalorder %s14, 0
    %p130 = por %p128, %p129
    %p131 = scmp.ne.s32.totalorder %s117, %s118
    %p132 = scmp.eq.s32.totalorder %s15, 1
    %p133 = por %p131, %p132
    %p135 = scmp.ne.s32.totalorder %s118, %s134
    %p136 = scmp.eq.s32.totalorder %s15, 0
    %p137 = por %p135, %p136
    %p138 = scmp.le.s32.totalorder 1, %s9
    %p139 = scmp.lt.s32.totalorder %s9, 3
    %p140 = pnand %p138, %p139
    %p141 = pneg %p140
    // Predicated region
    $region9: #{residual_block.2} parent=5 // pred_check
      _
    $region10: #{residual_block.2} parent=5 // pred_check_branch
      %143 = sbr.rel (%p140) target = $region12
    $region11: #{residual_block.2} parent=5 // pred_region
      %s144 = ssub.s32 %s9, 1
      // Predicated region
      $region13: #{residual_block.2} parent=11 // pred_check
        %p145 = pneg %p102
      $region14: #{residual_block.2} parent=11 // pred_check_branch
        %147 = sbr.rel (%p145) target = $region16
      $region15: #{residual_block.2} parent=11 // pred_region
        _
      $region16: #{residual_block.2} parent=11 // pred_fallthru
        _
    $region12: #{residual_block.2} parent=5 // pred_fallthru
      _
    %p148 = scmp.lt.s32.totalorder %s9, 2
    // Predicated region
    $region17: #{residual_block.2} parent=5 // pred_check
      %p149 = pneg %p148
    $region18: #{residual_block.2} parent=5 // pred_check_branch
      %151 = sbr.rel (%p149) target = $region20
    $region19: #{residual_block.2} parent=5 // pred_region
      // Predicated region
      $region21: #{residual_block.2} parent=19 // pred_check
        %p152 = pneg %p43
      $region22: #{residual_block.2} parent=19 // pred_check_branch
        %154 = sbr.rel (%p152) target = $region24
      $region23: #{residual_block.2} parent=19 // pred_region
        %s155 = smul.u32 16, %s17
        %s156 = ssub.s32 18, %s155
        %p157 = scmp.lt.s32.totalorder %s156, 16
        %s158 = scalar_select %p157, %s156, 16
        %s159 = smul.u32 128, %s158
        %s160 = smul.u32 %s159, 3
        %p161 = scmp.lt.s32.totalorder %s16, 1
        %s162 = scalar_select %p161, %s16, 1
        %p163 = scmp.lt.s32.totalorder %s155, 17
        %s164 = scalar_select %p163, %s155, 17
        %s165 = smul.addr %s164, 3
        %s166 = smul.addr %s162, 54
        %s167 = sadd.s32 %s165, %s166
        %s168 = smul.addr %s167, 8
        %s169 = scalar_lea.vmem %s0, %s168
        %s170 = smul.u32 16, %s17
        %s171 = ssub.s32 18, %s170
        %p172 = scmp.lt.s32.totalorder %s171, 16
        %s173 = scalar_select %p172, %s171, 16
        %s174 = smul.u32 128, %s173
        %s175 = smul.u32 %s174, 3
      $region24: #{residual_block.2} parent=19 // pred_fallthru
        _
      // Predicated region
      $region25: #{residual_block.2} parent=19 // pred_check
        %p176 = pneg %p75
      $region26: #{residual_block.2} parent=19 // pred_check_branch
        %178 = sbr.rel (%p176) target = $region28
      $region27: #{residual_block.2} parent=19 // pred_region
        %s179 = sadd.s32 %s17, 1
        %s180 = smul.u32 %s179, 8
        %s181 = smul.u32 2, %s180
        %p182 = scmp.lt.s32.totalorder %s16, 1
        %s183 = scalar_select %p182, %s16, 1
        %p184 = scmp.lt.s32.totalorder %s181, 17
        %s185 = scalar_select %p184, %s181, 17
        %s186 = smul.addr %s185, 3
        %s187 = smul.addr %s183, 54
        %s188 = sadd.s32 %s186, %s187
        %s189 = smul.addr %s188, 8
        %s190 = scalar_lea.vmem %s1, %s189
        %s191 = sadd.s32 %s17, 1
        %s192 = smul.u32 %s191, 8
        %s193 = smul.u32 2, %s192
      $region28: #{residual_block.2} parent=19 // pred_fallthru
        _
    $region20: #{residual_block.2} parent=5 // pred_fallthru
      _
    %p194 = scmp.le.s32.totalorder 1, %s9
    %p195 = scmp.lt.s32.totalorder %s9, 3
    %p196 = pnand %p194, %p195
    %p197 = pneg %p196
    // Predicated region
    $region29: #{residual_block.2} parent=5 // pred_check
      _
    $region30: #{residual_block.2} parent=5 // pred_check_branch
      %199 = sbr.rel (%p196) target = $region32
    $region31: #{residual_block.2} parent=5 // pred_region
      %s200 = ssub.s32 %s9, 1
      %s201 = smul.u32 16, %s19
      %s202 = ssub.s32 18, %s201
      %p203 = scmp.lt.s32.totalorder %s202, 16
      %s204 = scalar_select %p203, %s202, 16
      %s205 = smul.u32 128, %s204
      %s206 = smul.u32 %s205, 3
      %p207 = scmp.lt.s32.totalorder %s18, 1
      %s208 = scalar_select %p207, %s18, 1
      %p209 = scmp.lt.s32.totalorder %s201, 17
      %s210 = scalar_select %p209, %s201, 17
      %s211 = smul.addr %s210, 3
      %s212 = smul.addr %s208, 54
      %s213 = sadd.s32 %s211, %s212
      %s214 = smul.addr %s213, 8
      %s215 = scalar_lea.vmem %s0, %s214
      %p216 = pneg %p49
      %p217 = pneg %p46
      %s218 = sadd.s32 %s19, 1
      %s219 = smul.u32 %s218, 8
      %s220 = smul.u32 2, %s219
      %p221 = scmp.lt.s32.totalorder %s18, 1
      %s222 = scalar_select %p221, %s18, 1
      %p223 = scmp.lt.s32.totalorder %s220, 17
      %s224 = scalar_select %p223, %s220, 17
      %s225 = smul.addr %s224, 3
      %s226 = smul.addr %s222, 54
      %s227 = sadd.s32 %s225, %s226
      %s228 = smul.addr %s227, 8
      %s229 = scalar_lea.vmem %s1, %s228
      %p230 = pneg %p81
      %p231 = pneg %p78
      %p232 = pneg %p102
      %p233 = pneg %p99
      %p234 = pneg %p130
      %p235 = pneg %p127
      %s236 = smul.u32 32, %s19
      %p237 = scmp.lt.s32.totalorder %s18, 1
      %s238 = scalar_select %p237, %s18, 1
      %p239 = scmp.lt.s32.totalorder %s236, 31
      %s240 = scalar_select %p239, %s236, 31
      %s241 = smul.addr %s238, 32
      %s242 = sadd.s32 %s240, %s241
      %s243 = smul.addr %s242, 8
      %s244 = scalar_lea.vmem %s3, %s243
      %s245 = smul.u32 16, %s19
      %s246 = ssub.s32 18, %s245
      %p247 = scmp.lt.s32.totalorder %s246, 16
      %s248 = scalar_select %p247, %s246, 16
      %s249 = smul.u32 128, %s248
      %s250 = smul.u32 %s249, 3
      %p251 = scmp.lt.s32.totalorder %s18, 1
      %s252 = scalar_select %p251, %s18, 1
      %p253 = scmp.lt.s32.totalorder %s245, 17
      %s254 = scalar_select %p253, %s245, 17
      %s255 = smul.addr %s254, 3
      %s256 = smul.addr %s252, 54
      %s257 = sadd.s32 %s255, %s256
      %s258 = smul.addr %s257, 8
      %s259 = scalar_lea.vmem %s0, %s258
      %s260 = smul.u32 16, %s19
      %s261 = ssub.s32 18, %s260
      %p262 = scmp.lt.s32.totalorder %s261, 16
      %s263 = scalar_select %p262, %s261, 16
      %s264 = smul.u32 128, %s263
      %s265 = smul.u32 %s264, 3
      %s266 = sadd.s32 %s19, 1
      %s267 = smul.u32 %s266, 8
      %s268 = smul.u32 2, %s267
      %p269 = scmp.lt.s32.totalorder %s18, 1
      %s270 = scalar_select %p269, %s18, 1
      %p271 = scmp.lt.s32.totalorder %s268, 17
      %s272 = scalar_select %p271, %s268, 17
      %s273 = smul.addr %s272, 3
      %s274 = smul.addr %s270, 54
      %s275 = sadd.s32 %s273, %s274
      %s276 = smul.addr %s275, 8
      %s277 = scalar_lea.vmem %s1, %s276
      %s278 = sadd.s32 %s19, 1
      %s279 = smul.u32 %s278, 8
      %s280 = smul.u32 2, %s279
      %s281 = smul.u32 32, %s19
      %p282 = scmp.lt.s32.totalorder %s18, 1
      %s283 = scalar_select %p282, %s18, 1
      %p284 = scmp.lt.s32.totalorder %s281, 31
      %s285 = scalar_select %p284, %s281, 31
      %s286 = smul.addr %s283, 32
      %s287 = sadd.s32 %s285, %s286
      %s288 = smul.addr %s287, 8
      %s289 = scalar_lea.vmem %s3, %s288
      %s290 = smul.u32 32, %s19
      %v292 = vld [vmem:[%s259] sm:$0xff]
      %v293 = vld [vmem:[%s259 + $0x8] sm:$0xff]
      %v294 = vld [vmem:[%s259 + $0x10] sm:$0x3]
      %v295 = vld [vmem:[%s259 + $0x18] sm:$0xff]
      %v296 = vld [vmem:[%s259 + $0x20] sm:$0xff]
      %v297 = vld [vmem:[%s259 + $0x28] sm:$0x3]
      %v298 = vld [vmem:[%s259 + $0x30] sm:$0xff]
      %v299 = vld [vmem:[%s259 + $0x38] sm:$0xff]
      %v300 = vld [vmem:[%s259 + $0x40] sm:$0x3]
      %v301 = vld [vmem:[%s259 + $0x48] sm:$0xff]
      %v302 = vld [vmem:[%s259 + $0x50] sm:$0xff]
      %v303 = vld [vmem:[%s259 + $0x58] sm:$0x3]
      %v304 = vld [vmem:[%s259 + $0x60] sm:$0xff]
      %v305 = vld [vmem:[%s259 + $0x68] sm:$0xff]
      %v306 = vld [vmem:[%s259 + $0x70] sm:$0x3]
      %v307 = vld [vmem:[%s259 + $0x78] sm:$0xff]
      %v308 = vld [vmem:[%s259 + $0x80] sm:$0xff]
      %v309 = vld [vmem:[%s259 + $0x88] sm:$0x3]
      %v310 = vld [vmem:[%s259 + $0x90] sm:$0xff]
      %v311 = vld [vmem:[%s259 + $0x98] sm:$0xff]
      %v312 = vld [vmem:[%s259 + $0xa0] sm:$0x3]
      %v313 = vld [vmem:[%s259 + $0xa8] sm:$0xff]
      %v314 = vld [vmem:[%s259 + $0xb0] sm:$0xff]
      %v315 = vld [vmem:[%s259 + $0xb8] sm:$0x3]
      %v316 = vld [vmem:[%s259 + $0xc0] sm:$0xff]
      %v317 = vld [vmem:[%s259 + $0xc8] sm:$0xff]
      %v318 = vld [vmem:[%s259 + $0xd0] sm:$0x3]
      %v319 = vld [vmem:[%s259 + $0xd8] sm:$0xff]
      %v320 = vld [vmem:[%s259 + $0xe0] sm:$0xff]
      %v321 = vld [vmem:[%s259 + $0xe8] sm:$0x3]
      %v322 = vld [vmem:[%s259 + $0xf0] sm:$0xff]
      %v323 = vld [vmem:[%s259 + $0xf8] sm:$0xff]
      %v324 = vld [vmem:[%s259 + $0x100] sm:$0x3]
      %v325 = vld [vmem:[%s259 + $0x108] sm:$0xff]
      %v326 = vld [vmem:[%s259 + $0x110] sm:$0xff]
      %v327 = vld [vmem:[%s259 + $0x118] sm:$0x3]
      %v328 = vld [vmem:[%s259 + $0x120] sm:$0xff]
      %v329 = vld [vmem:[%s259 + $0x128] sm:$0xff]
      %v330 = vld [vmem:[%s259 + $0x130] sm:$0x3]
      %v331 = vld [vmem:[%s259 + $0x138] sm:$0xff]
      %v332 = vld [vmem:[%s259 + $0x140] sm:$0xff]
      %v333 = vld [vmem:[%s259 + $0x148] sm:$0x3]
      %v334 = vld [vmem:[%s259 + $0x150] sm:$0xff]
      %v335 = vld [vmem:[%s259 + $0x158] sm:$0xff]
      %v336 = vld [vmem:[%s259 + $0x160] sm:$0x3]
      %v337 = vld [vmem:[%s259 + $0x168] sm:$0xff]
      %v338 = vld [vmem:[%s259 + $0x170] sm:$0xff]
      %v339 = vld [vmem:[%s259 + $0x178] sm:$0x3]
      %v340 = vld [vmem:[%s277] sm:$0xff]
      %v341 = vld [vmem:[%s277 + $0x8] sm:$0xff]
      %v342 = vld [vmem:[%s277 + $0x10] sm:$0x3]
      %v343 = vld [vmem:[%s277 + $0x18] sm:$0xff]
      %v344 = vld [vmem:[%s277 + $0x20] sm:$0xff]
      %v345 = vld [vmem:[%s277 + $0x28] sm:$0x3]
      %v346 = vpack.c.bf16 %v293, %v292
      %v347 = vpack.c.bf16 %v294, %v294
      %v348 = vpack.c.bf16 %v296, %v295
      %v349 = vpack.c.bf16 %v297, %v297
      %v350 = vpack.c.bf16 %v299, %v298
      %v351 = vpack.c.bf16 %v300, %v300
      %v352 = vpack.c.bf16 %v302, %v301
      %v353 = vpack.c.bf16 %v303, %v303
      %v354 = vpack.c.bf16 %v305, %v304
      %v355 = vpack.c.bf16 %v306, %v306
      %v356 = vpack.c.bf16 %v308, %v307
      %v357 = vpack.c.bf16 %v309, %v309
      %v358 = vpack.c.bf16 %v311, %v310
      %v359 = vpack.c.bf16 %v312, %v312
      %v360 = vpack.c.bf16 %v314, %v313
      %v361 = vpack.c.bf16 %v315, %v315
      %v362 = vpack.c.bf16 %v317, %v316
      %v363 = vpack.c.bf16 %v318, %v318
      %v364 = vpack.c.bf16 %v320, %v319
      %v365 = vpack.c.bf16 %v321, %v321
      %v366 = vpack.c.bf16 %v323, %v322
      %v367 = vpack.c.bf16 %v324, %v324
      %v368 = vpack.c.bf16 %v326, %v325
      %v369 = vpack.c.bf16 %v327, %v327
      %v370 = vpack.c.bf16 %v329, %v328
      %v371 = vpack.c.bf16 %v330, %v330
      %v372 = vpack.c.bf16 %v332, %v331
      %v373 = vpack.c.bf16 %v333, %v333
      %v374 = vpack.c.bf16 %v335, %v334
      %v375 = vpack.c.bf16 %v336, %v336
      %v376 = vpack.c.bf16 %v338, %v337
      %v377 = vpack.c.bf16 %v339, %v339
      %v378 = vpack.c.bf16 %v341, %v340
      %v379 = vpack.c.bf16 %v342, %v342
      %v380 = vpack.c.bf16 %v344, %v343
      %v381 = vpack.c.bf16 %v345, %v345
      %vm382 = vsmask.f32 7424
      %v384 = vshrl.u32 %v346, 16
      %v386 = vshll.u32 %v346, 16
      %v388 = vrot.slane %v386, 1
      %v389 = vor.u32 %v384, %v388
      %v391 = vshll.u32 %v347, 16
      %v393 = vrot.slane %v391, 1
      %v394 = vsel %vm382, %v389, %v393
      %v396 = vshrl.u32 %v348, 16
      %v398 = vshll.u32 %v348, 16
      %v400 = vrot.slane %v398, 1
      %v401 = vor.u32 %v396, %v400
      %v403 = vshll.u32 %v349, 16
      %v405 = vrot.slane %v403, 1
      %v406 = vsel %vm382, %v401, %v405
      %v408 = vshrl.u32 %v350, 16
      %v410 = vshll.u32 %v350, 16
      %v412 = vrot.slane %v410, 1
      %v413 = vor.u32 %v408, %v412
      %v415 = vshll.u32 %v351, 16
      %v417 = vrot.slane %v415, 1
      %v418 = vsel %vm382, %v413, %v417
      %v420 = vshrl.u32 %v352, 16
      %v422 = vshll.u32 %v352, 16
      %v424 = vrot.slane %v422, 1
      %v425 = vor.u32 %v420, %v424
      %v427 = vshll.u32 %v353, 16
      %v429 = vrot.slane %v427, 1
      %v430 = vsel %vm382, %v425, %v429
      %v432 = vshrl.u32 %v354, 16
      %v434 = vshll.u32 %v354, 16
      %v436 = vrot.slane %v434, 1
      %v437 = vor.u32 %v432, %v436
      %v439 = vshll.u32 %v355, 16
      %v441 = vrot.slane %v439, 1
      %v442 = vsel %vm382, %v437, %v441
      %v444 = vshrl.u32 %v356, 16
      %v446 = vshll.u32 %v356, 16
      %v448 = vrot.slane %v446, 1
      %v449 = vor.u32 %v444, %v448
      %v451 = vshll.u32 %v357, 16
      %v453 = vrot.slane %v451, 1
      %v454 = vsel %vm382, %v449, %v453
      %v456 = vshrl.u32 %v358, 16
      %v458 = vshll.u32 %v358, 16
      %v460 = vrot.slane %v458, 1
      %v461 = vor.u32 %v456, %v460
      %v463 = vshll.u32 %v359, 16
      %v465 = vrot.slane %v463, 1
      %v466 = vsel %vm382, %v461, %v465
      %v468 = vshrl.u32 %v360, 16
      %v470 = vshll.u32 %v360, 16
      %v472 = vrot.slane %v470, 1
      %v473 = vor.u32 %v468, %v472
      %v475 = vshll.u32 %v361, 16
      %v477 = vrot.slane %v475, 1
      %v478 = vsel %vm382, %v473, %v477
      %v480 = vshrl.u32 %v362, 16
      %v482 = vshll.u32 %v362, 16
      %v484 = vrot.slane %v482, 1
      %v485 = vor.u32 %v480, %v484
      %v487 = vshll.u32 %v363, 16
      %v489 = vrot.slane %v487, 1
      %v490 = vsel %vm382, %v485, %v489
      %v492 = vshrl.u32 %v364, 16
      %v494 = vshll.u32 %v364, 16
      %v496 = vrot.slane %v494, 1
      %v497 = vor.u32 %v492, %v496
      %v499 = vshll.u32 %v365, 16
      %v501 = vrot.slane %v499, 1
      %v502 = vsel %vm382, %v497, %v501
      %v504 = vshrl.u32 %v366, 16
      %v506 = vshll.u32 %v366, 16
      %v508 = vrot.slane %v506, 1
      %v509 = vor.u32 %v504, %v508
      %v511 = vshll.u32 %v367, 16
      %v513 = vrot.slane %v511, 1
      %v514 = vsel %vm382, %v509, %v513
      %v516 = vshrl.u32 %v368, 16
      %v518 = vshll.u32 %v368, 16
      %v520 = vrot.slane %v518, 1
      %v521 = vor.u32 %v516, %v520
      %v523 = vshll.u32 %v369, 16
      %v525 = vrot.slane %v523, 1
      %v526 = vsel %vm382, %v521, %v525
      %v528 = vshrl.u32 %v370, 16
      %v530 = vshll.u32 %v370, 16
      %v532 = vrot.slane %v530, 1
      %v533 = vor.u32 %v528, %v532
      %v535 = vshll.u32 %v371, 16
      %v537 = vrot.slane %v535, 1
      %v538 = vsel %vm382, %v533, %v537
      %v540 = vshrl.u32 %v372, 16
      %v542 = vshll.u32 %v372, 16
      %v544 = vrot.slane %v542, 1
      %v545 = vor.u32 %v540, %v544
      %v547 = vshll.u32 %v373, 16
      %v549 = vrot.slane %v547, 1
      %v550 = vsel %vm382, %v545, %v549
      %v552 = vshrl.u32 %v374, 16
      %v554 = vshll.u32 %v374, 16
      %v556 = vrot.slane %v554, 1
      %v557 = vor.u32 %v552, %v556
      %v559 = vshll.u32 %v375, 16
      %v561 = vrot.slane %v559, 1
      %v562 = vsel %vm382, %v557, %v561
      %v564 = vshrl.u32 %v376, 16
      %v566 = vshll.u32 %v376, 16
      %v568 = vrot.slane %v566, 1
      %v569 = vor.u32 %v564, %v568
      %v571 = vshll.u32 %v377, 16
      %v573 = vrot.slane %v571, 1
      %v574 = vsel %vm382, %v569, %v573
      %575 = vrot.lane.b32.xlu0 %v394, 8
      %v576 = vpop.permute.xlu0 %575
      %577 = vrot.lane.b32.xlu0 %v406, 8
      %v578 = vpop.permute.xlu0 %577
      %579 = vrot.lane.b32.xlu0 %v418, 8
      %v580 = vpop.permute.xlu0 %579
      %581 = vrot.lane.b32.xlu0 %v430, 8
      %v582 = vpop.permute.xlu0 %581
      %583 = vrot.lane.b32.xlu0 %v442, 8
      %v584 = vpop.permute.xlu0 %583
      %585 = vrot.lane.b32.xlu0 %v454, 8
      %v586 = vpop.permute.xlu0 %585
      %587 = vrot.lane.b32.xlu0 %v466, 8
      %v588 = vpop.permute.xlu0 %587
      %589 = vrot.lane.b32.xlu0 %v478, 8
      %v590 = vpop.permute.xlu0 %589
      %591 = vrot.lane.b32.xlu0 %v490, 8
      %v592 = vpop.permute.xlu0 %591
      %593 = vrot.lane.b32.xlu0 %v502, 8
      %v594 = vpop.permute.xlu0 %593
      %595 = vrot.lane.b32.xlu0 %v514, 8
      %v596 = vpop.permute.xlu0 %595
      %597 = vrot.lane.b32.xlu0 %v526, 8
      %v598 = vpop.permute.xlu0 %597
      %599 = vrot.lane.b32.xlu0 %v538, 8
      %v600 = vpop.permute.xlu0 %599
      %601 = vrot.lane.b32.xlu0 %v550, 8
      %v602 = vpop.permute.xlu0 %601
      %603 = vrot.lane.b32.xlu0 %v562, 8
      %v604 = vpop.permute.xlu0 %603
      %605 = vrot.lane.b32.xlu0 %v574, 8
      %v606 = vpop.permute.xlu0 %605
      %vm639 = vcmask 1046528
      %v640 = vrot.slane %v346, 1
      %v641 = vrot.slane %v347, 1
      %v642 = vsel %vm639, %v640, %v641
      %v643 = vrot.slane %v348, 1
      %v644 = vrot.slane %v349, 1
      %v645 = vsel %vm639, %v643, %v644
      %v646 = vrot.slane %v350, 1
      %v647 = vrot.slane %v351, 1
      %v648 = vsel %vm639, %v646, %v647
      %v649 = vrot.slane %v352, 1
      %v650 = vrot.slane %v353, 1
      %v651 = vsel %vm639, %v649, %v650
      %v652 = vrot.slane %v354, 1
      %v653 = vrot.slane %v355, 1
      %v654 = vsel %vm639, %v652, %v653
      %v655 = vrot.slane %v356, 1
      %v656 = vrot.slane %v357, 1
      %v657 = vsel %vm639, %v655, %v656
      %v658 = vrot.slane %v358, 1
      %v659 = vrot.slane %v359, 1
      %v660 = vsel %vm639, %v658, %v659
      %v661 = vrot.slane %v360, 1
      %v662 = vrot.slane %v361, 1
      %v663 = vsel %vm639, %v661, %v662
      %v664 = vrot.slane %v362, 1
      %v665 = vrot.slane %v363, 1
      %v666 = vsel %vm639, %v664, %v665
      %v667 = vrot.slane %v364, 1
      %v668 = vrot.slane %v365, 1
      %v669 = vsel %vm639, %v667, %v668
      %v670 = vrot.slane %v366, 1
      %v671 = vrot.slane %v367, 1
      %v672 = vsel %vm639, %v670, %v671
      %v673 = vrot.slane %v368, 1
      %v674 = vrot.slane %v369, 1
      %v675 = vsel %vm639, %v673, %v674
      %v676 = vrot.slane %v370, 1
      %v677 = vrot.slane %v371, 1
      %v678 = vsel %vm639, %v676, %v677
      %v679 = vrot.slane %v372, 1
      %v680 = vrot.slane %v373, 1
      %v681 = vsel %vm639, %v679, %v680
      %v682 = vrot.slane %v374, 1
      %v683 = vrot.slane %v375, 1
      %v684 = vsel %vm639, %v682, %v683
      %v685 = vrot.slane %v376, 1
      %v686 = vrot.slane %v377, 1
      %v687 = vsel %vm639, %v685, %v686
      %688 = vrot.lane.b32.xlu0 %v642, 16
      %v689 = vpop.permute.xlu0 %688
      %690 = vrot.lane.b32.xlu0 %v645, 16
      %v691 = vpop.permute.xlu0 %690
      %692 = vrot.lane.b32.xlu0 %v648, 16
      %v693 = vpop.permute.xlu0 %692
      %694 = vrot.lane.b32.xlu0 %v651, 16
      %v695 = vpop.permute.xlu0 %694
      %696 = vrot.lane.b32.xlu0 %v654, 16
      %v697 = vpop.permute.xlu0 %696
      %698 = vrot.lane.b32.xlu0 %v657, 16
      %v699 = vpop.permute.xlu0 %698
      %700 = vrot.lane.b32.xlu0 %v660, 16
      %v701 = vpop.permute.xlu0 %700
      %702 = vrot.lane.b32.xlu0 %v663, 16
      %v703 = vpop.permute.xlu0 %702
      %704 = vrot.lane.b32.xlu0 %v666, 16
      %v705 = vpop.permute.xlu0 %704
      %706 = vrot.lane.b32.xlu0 %v669, 16
      %v707 = vpop.permute.xlu0 %706
      %708 = vrot.lane.b32.xlu0 %v672, 16
      %v709 = vpop.permute.xlu0 %708
      %710 = vrot.lane.b32.xlu0 %v675, 16
      %v711 = vpop.permute.xlu0 %710
      %712 = vrot.lane.b32.xlu0 %v678, 16
      %v713 = vpop.permute.xlu0 %712
      %714 = vrot.lane.b32.xlu0 %v681, 16
      %v715 = vpop.permute.xlu0 %714
      %716 = vrot.lane.b32.xlu0 %v684, 16
      %v717 = vpop.permute.xlu0 %716
      %718 = vrot.lane.b32.xlu0 %v687, 16
      %v719 = vpop.permute.xlu0 %718
      %721 = vrot.lane.b32.xlu0 %v348, 24
      %v722 = vpop.permute.xlu0 %721
      %723 = vrot.lane.b32.xlu0 %v350, 24
      %v724 = vpop.permute.xlu0 %723
      %725 = vrot.lane.b32.xlu0 %v352, 24
      %v726 = vpop.permute.xlu0 %725
      %727 = vrot.lane.b32.xlu0 %v354, 24
      %v728 = vpop.permute.xlu0 %727
      %729 = vrot.lane.b32.xlu0 %v356, 24
      %v730 = vpop.permute.xlu0 %729
      %731 = vrot.lane.b32.xlu0 %v358, 24
      %v732 = vpop.permute.xlu0 %731
      %733 = vrot.lane.b32.xlu0 %v360, 24
      %v734 = vpop.permute.xlu0 %733
      %735 = vrot.lane.b32.xlu0 %v362, 24
      %v736 = vpop.permute.xlu0 %735
      %737 = vrot.lane.b32.xlu0 %v364, 24
      %v738 = vpop.permute.xlu0 %737
      %739 = vrot.lane.b32.xlu0 %v366, 24
      %v740 = vpop.permute.xlu0 %739
      %741 = vrot.lane.b32.xlu0 %v368, 24
      %v742 = vpop.permute.xlu0 %741
      %743 = vrot.lane.b32.xlu0 %v370, 24
      %v744 = vpop.permute.xlu0 %743
      %745 = vrot.lane.b32.xlu0 %v372, 24
      %v746 = vpop.permute.xlu0 %745
      %747 = vrot.lane.b32.xlu0 %v374, 24
      %v748 = vpop.permute.xlu0 %747
      %749 = vrot.lane.b32.xlu0 %v376, 24
      %v750 = vpop.permute.xlu0 %749
      %751 = vrot.lane.b32.xlu0 %v378, 24
      %v752 = vpop.permute.xlu0 %751
      %v754 = vshrl.u32 %v378, 16
      %v756 = vshll.u32 %v378, 16
      %v758 = vrot.slane %v756, 1
      %v759 = vor.u32 %v754, %v758
      %v761 = vshll.u32 %v379, 16
      %v763 = vrot.slane %v761, 1
      %v764 = vsel %vm382, %v759, %v763
      %765 = vrot.lane.b32.xlu0 %v406, 32
      %v766 = vpop.permute.xlu0 %765
      %767 = vrot.lane.b32.xlu0 %v418, 32
      %v768 = vpop.permute.xlu0 %767
      %769 = vrot.lane.b32.xlu0 %v430, 32
      %v770 = vpop.permute.xlu0 %769
      %771 = vrot.lane.b32.xlu0 %v442, 32
      %v772 = vpop.permute.xlu0 %771
      %773 = vrot.lane.b32.xlu0 %v454, 32
      %v774 = vpop.permute.xlu0 %773
      %775 = vrot.lane.b32.xlu0 %v466, 32
      %v776 = vpop.permute.xlu0 %775
      %777 = vrot.lane.b32.xlu0 %v478, 32
      %v778 = vpop.permute.xlu0 %777
      %779 = vrot.lane.b32.xlu0 %v490, 32
      %v780 = vpop.permute.xlu0 %779
      %781 = vrot.lane.b32.xlu0 %v502, 32
      %v782 = vpop.permute.xlu0 %781
      %783 = vrot.lane.b32.xlu0 %v514, 32
      %v784 = vpop.permute.xlu0 %783
      %785 = vrot.lane.b32.xlu0 %v526, 32
      %v786 = vpop.permute.xlu0 %785
      %787 = vrot.lane.b32.xlu0 %v538, 32
      %v788 = vpop.permute.xlu0 %787
      %789 = vrot.lane.b32.xlu0 %v550, 32
      %v790 = vpop.permute.xlu0 %789
      %791 = vrot.lane.b32.xlu0 %v562, 32
      %v792 = vpop.permute.xlu0 %791
      %793 = vrot.lane.b32.xlu0 %v574, 32
      %v794 = vpop.permute.xlu0 %793
      %795 = vrot.lane.b32.xlu0 %v764, 32
      %v796 = vpop.permute.xlu0 %795
      %v798 = vrot.slane %v378, 1
      %v799 = vrot.slane %v379, 1
      %v800 = vsel %vm639, %v798, %v799
      %801 = vrot.lane.b32.xlu0 %v645, 40
      %v802 = vpop.permute.xlu0 %801
      %803 = vrot.lane.b32.xlu0 %v648, 40
      %v804 = vpop.permute.xlu0 %803
      %805 = vrot.lane.b32.xlu0 %v651, 40
      %v806 = vpop.permute.xlu0 %805
      %807 = vrot.lane.b32.xlu0 %v654, 40
      %v808 = vpop.permute.xlu0 %807
      %809 = vrot.lane.b32.xlu0 %v657, 40
      %v810 = vpop.permute.xlu0 %809
      %811 = vrot.lane.b32.xlu0 %v660, 40
      %v812 = vpop.permute.xlu0 %811
      %813 = vrot.lane.b32.xlu0 %v663, 40
      %v814 = vpop.permute.xlu0 %813
      %815 = vrot.lane.b32.xlu0 %v666, 40
      %v816 = vpop.permute.xlu0 %815
      %817 = vrot.lane.b32.xlu0 %v669, 40
      %v818 = vpop.permute.xlu0 %817
      %819 = vrot.lane.b32.xlu0 %v672, 40
      %v820 = vpop.permute.xlu0 %819
      %821 = vrot.lane.b32.xlu0 %v675, 40
      %v822 = vpop.permute.xlu0 %821
      %823 = vrot.lane.b32.xlu0 %v678, 40
      %v824 = vpop.permute.xlu0 %823
      %825 = vrot.lane.b32.xlu0 %v681, 40
      %v826 = vpop.permute.xlu0 %825
      %827 = vrot.lane.b32.xlu0 %v684, 40
      %v828 = vpop.permute.xlu0 %827
      %829 = vrot.lane.b32.xlu0 %v687, 40
      %v830 = vpop.permute.xlu0 %829
      %831 = vrot.lane.b32.xlu0 %v800, 40
      %v832 = vpop.permute.xlu0 %831
      %834 = vrot.lane.b32.xlu0 %v350, 48
      %v835 = vpop.permute.xlu0 %834
      %836 = vrot.lane.b32.xlu0 %v352, 48
      %v837 = vpop.permute.xlu0 %836
      %838 = vrot.lane.b32.xlu0 %v354, 48
      %v839 = vpop.permute.xlu0 %838
      %840 = vrot.lane.b32.xlu0 %v356, 48
      %v841 = vpop.permute.xlu0 %840
      %842 = vrot.lane.b32.xlu0 %v358, 48
      %v843 = vpop.permute.xlu0 %842
      %844 = vrot.lane.b32.xlu0 %v360, 48
      %v845 = vpop.permute.xlu0 %844
      %846 = vrot.lane.b32.xlu0 %v362, 48
      %v847 = vpop.permute.xlu0 %846
      %848 = vrot.lane.b32.xlu0 %v364, 48
      %v849 = vpop.permute.xlu0 %848
      %850 = vrot.lane.b32.xlu0 %v366, 48
      %v851 = vpop.permute.xlu0 %850
      %852 = vrot.lane.b32.xlu0 %v368, 48
      %v853 = vpop.permute.xlu0 %852
      %854 = vrot.lane.b32.xlu0 %v370, 48
      %v855 = vpop.permute.xlu0 %854
      %856 = vrot.lane.b32.xlu0 %v372, 48
      %v857 = vpop.permute.xlu0 %856
      %858 = vrot.lane.b32.xlu0 %v374, 48
      %v859 = vpop.permute.xlu0 %858
      %860 = vrot.lane.b32.xlu0 %v376, 48
      %v861 = vpop.permute.xlu0 %860
      %862 = vrot.lane.b32.xlu0 %v378, 48
      %v863 = vpop.permute.xlu0 %862
      %864 = vrot.lane.b32.xlu0 %v380, 48
      %v865 = vpop.permute.xlu0 %864
      %v867 = vshrl.u32 %v380, 16
      %v869 = vshll.u32 %v380, 16
      %v871 = vrot.slane %v869, 1
      %v872 = vor.u32 %v867, %v871
      %v874 = vshll.u32 %v381, 16
      %v876 = vrot.slane %v874, 1
      %v877 = vsel %vm382, %v872, %v876
      %878 = vrot.lane.b32.xlu0 %v418, 56
      %v879 = vpop.permute.xlu0 %878
      %880 = vrot.lane.b32.xlu0 %v430, 56
      %v881 = vpop.permute.xlu0 %880
      %882 = vrot.lane.b32.xlu0 %v442, 56
      %v883 = vpop.permute.xlu0 %882
      %884 = vrot.lane.b32.xlu0 %v454, 56
      %v885 = vpop.permute.xlu0 %884
      %886 = vrot.lane.b32.xlu0 %v466, 56
      %v887 = vpop.permute.xlu0 %886
      %888 = vrot.lane.b32.xlu0 %v478, 56
      %v889 = vpop.permute.xlu0 %888
      %890 = vrot.lane.b32.xlu0 %v490, 56
      %v891 = vpop.permute.xlu0 %890
      %892 = vrot.lane.b32.xlu0 %v502, 56
      %v893 = vpop.permute.xlu0 %892
      %894 = vrot.lane.b32.xlu0 %v514, 56
      %v895 = vpop.permute.xlu0 %894
      %896 = vrot.lane.b32.xlu0 %v526, 56
      %v897 = vpop.permute.xlu0 %896
      %898 = vrot.lane.b32.xlu0 %v538, 56
      %v899 = vpop.permute.xlu0 %898
      %900 = vrot.lane.b32.xlu0 %v550, 56
      %v901 = vpop.permute.xlu0 %900
      %902 = vrot.lane.b32.xlu0 %v562, 56
      %v903 = vpop.permute.xlu0 %902
      %904 = vrot.lane.b32.xlu0 %v574, 56
      %v905 = vpop.permute.xlu0 %904
      %906 = vrot.lane.b32.xlu0 %v764, 56
      %v907 = vpop.permute.xlu0 %906
      %908 = vrot.lane.b32.xlu0 %v877, 56
      %v909 = vpop.permute.xlu0 %908
      %v911 = vrot.slane %v380, 1
      %v912 = vrot.slane %v381, 1
      %v913 = vsel %vm639, %v911, %v912
      %914 = vrot.lane.b32.xlu0 %v648, 64
      %v915 = vpop.permute.xlu0 %914
      %916 = vrot.lane.b32.xlu0 %v651, 64
      %v917 = vpop.permute.xlu0 %916
      %918 = vrot.lane.b32.xlu0 %v654, 64
      %v919 = vpop.permute.xlu0 %918
      %920 = vrot.lane.b32.xlu0 %v657, 64
      %v921 = vpop.permute.xlu0 %920
      %922 = vrot.lane.b32.xlu0 %v660, 64
      %v923 = vpop.permute.xlu0 %922
      %924 = vrot.lane.b32.xlu0 %v663, 64
      %v925 = vpop.permute.xlu0 %924
      %926 = vrot.lane.b32.xlu0 %v666, 64
      %v927 = vpop.permute.xlu0 %926
      %928 = vrot.lane.b32.xlu0 %v669, 64
      %v929 = vpop.permute.xlu0 %928
      %930 = vrot.lane.b32.xlu0 %v672, 64
      %v931 = vpop.permute.xlu0 %930
      %932 = vrot.lane.b32.xlu0 %v675, 64
      %v933 = vpop.permute.xlu0 %932
      %934 = vrot.lane.b32.xlu0 %v678, 64
      %v935 = vpop.permute.xlu0 %934
      %936 = vrot.lane.b32.xlu0 %v681, 64
      %v937 = vpop.permute.xlu0 %936
      %938 = vrot.lane.b32.xlu0 %v684, 64
      %v939 = vpop.permute.xlu0 %938
      %940 = vrot.lane.b32.xlu0 %v687, 64
      %v941 = vpop.permute.xlu0 %940
      %942 = vrot.lane.b32.xlu0 %v800, 64
      %v943 = vpop.permute.xlu0 %942
      %944 = vrot.lane.b32.xlu0 %v913, 64
      %v945 = vpop.permute.xlu0 %944
      %vm946 = vcmask 64512
      %v948 = vsel %vm946, %v346, %v576
      %v950 = vsel %vm946, %v348, %v578
      %v952 = vsel %vm946, %v350, %v580
      %v954 = vsel %vm946, %v352, %v582
      %v956 = vsel %vm946, %v354, %v584
      %v958 = vsel %vm946, %v356, %v586
      %v960 = vsel %vm946, %v358, %v588
      %v962 = vsel %vm946, %v360, %v590
      %v964 = vsel %vm946, %v362, %v592
      %v966 = vsel %vm946, %v364, %v594
      %v968 = vsel %vm946, %v366, %v596
      %v970 = vsel %vm946, %v368, %v598
      %v972 = vsel %vm946, %v370, %v600
      %v974 = vsel %vm946, %v372, %v602
      %v976 = vsel %vm946, %v374, %v604
      %v978 = vsel %vm946, %v376, %v606
      %vm979 = vcmask 130048
      %v981 = vsel %vm979, %v948, %v689
      %v983 = vsel %vm979, %v950, %v691
      %v985 = vsel %vm979, %v952, %v693
      %v987 = vsel %vm979, %v954, %v695
      %v989 = vsel %vm979, %v956, %v697
      %v991 = vsel %vm979, %v958, %v699
      %v993 = vsel %vm979, %v960, %v701
      %v995 = vsel %vm979, %v962, %v703
      %v997 = vsel %vm979, %v964, %v705
      %v999 = vsel %vm979, %v966, %v707
      %v1001 = vsel %vm979, %v968, %v709
      %v1003 = vsel %vm979, %v970, %v711
      %v1005 = vsel %vm979, %v972, %v713
      %v1007 = vsel %vm979, %v974, %v715
      %v1009 = vsel %vm979, %v976, %v717
      %v1011 = vsel %vm979, %v978, %v719
      %vm1012 = vcmask 195584
      %v1014 = vsel %vm1012, %v981, %v722
      %v1016 = vsel %vm1012, %v983, %v724
      %v1018 = vsel %vm1012, %v985, %v726
      %v1020 = vsel %vm1012, %v987, %v728
      %v1022 = vsel %vm1012, %v989, %v730
      %v1024 = vsel %vm1012, %v991, %v732
      %v1026 = vsel %vm1012, %v993, %v734
      %v1028 = vsel %vm1012, %v995, %v736
      %v1030 = vsel %vm1012, %v997, %v738
      %v1032 = vsel %vm1012, %v999, %v740
      %v1034 = vsel %vm1012, %v1001, %v742
      %v1036 = vsel %vm1012, %v1003, %v744
      %v1038 = vsel %vm1012, %v1005, %v746
      %v1040 = vsel %vm1012, %v1007, %v748
      %v1042 = vsel %vm1012, %v1009, %v750
      %v1044 = vsel %vm1012, %v1011, %v752
      %vm1045 = vcmask 261120
      %v1047 = vsel %vm1045, %v1014, %v766
      %v1049 = vsel %vm1045, %v1016, %v768
      %v1051 = vsel %vm1045, %v1018, %v770
      %v1053 = vsel %vm1045, %v1020, %v772
      %v1055 = vsel %vm1045, %v1022, %v774
      %v1057 = vsel %vm1045, %v1024, %v776
      %v1059 = vsel %vm1045, %v1026, %v778
      %v1061 = vsel %vm1045, %v1028, %v780
      %v1063 = vsel %vm1045, %v1030, %v782
      %v1065 = vsel %vm1045, %v1032, %v784
      %v1067 = vsel %vm1045, %v1034, %v786
      %v1069 = vsel %vm1045, %v1036, %v788
      %v1071 = vsel %vm1045, %v1038, %v790
      %v1073 = vsel %vm1045, %v1040, %v792
      %v1075 = vsel %vm1045, %v1042, %v794
      %v1077 = vsel %vm1045, %v1044, %v796
      %vm1078 = vcmask 326656
      %v1080 = vsel %vm1078, %v1047, %v802
      %v1082 = vsel %vm1078, %v1049, %v804
      %v1084 = vsel %vm1078, %v1051, %v806
      %v1086 = vsel %vm1078, %v1053, %v808
      %v1088 = vsel %vm1078, %v1055, %v810
      %v1090 = vsel %vm1078, %v1057, %v812
      %v1092 = vsel %vm1078, %v1059, %v814
      %v1094 = vsel %vm1078, %v1061, %v816
      %v1096 = vsel %vm1078, %v1063, %v818
      %v1098 = vsel %vm1078, %v1065, %v820
      %v1100 = vsel %vm1078, %v1067, %v822
      %v1102 = vsel %vm1078, %v1069, %v824
      %v1104 = vsel %vm1078, %v1071, %v826
      %v1106 = vsel %vm1078, %v1073, %v828
      %v1108 = vsel %vm1078, %v1075, %v830
      %v1110 = vsel %vm1078, %v1077, %v832
      %vm1111 = vcmask 392192
      %v1113 = vsel %vm1111, %v1080, %v835
      %v1115 = vsel %vm1111, %v1082, %v837
      %v1117 = vsel %vm1111, %v1084, %v839
      %v1119 = vsel %vm1111, %v1086, %v841
      %v1121 = vsel %vm1111, %v1088, %v843
      %v1123 = vsel %vm1111, %v1090, %v845
      %v1125 = vsel %vm1111, %v1092, %v847
      %v1127 = vsel %vm1111, %v1094, %v849
      %v1129 = vsel %vm1111, %v1096, %v851
      %v1131 = vsel %vm1111, %v1098, %v853
      %v1133 = vsel %vm1111, %v1100, %v855
      %v1135 = vsel %vm1111, %v1102, %v857
      %v1137 = vsel %vm1111, %v1104, %v859
      %v1139 = vsel %vm1111, %v1106, %v861
      %v1141 = vsel %vm1111, %v1108, %v863
      %v1143 = vsel %vm1111, %v1110, %v865
      %vm1144 = vcmask 457728
      %v1146 = vsel %vm1144, %v1113, %v879
      %v1148 = vsel %vm1144, %v1115, %v881
      %v1150 = vsel %vm1144, %v1117, %v883
      %v1152 = vsel %vm1144, %v1119, %v885
      %v1154 = vsel %vm1144, %v1121, %v887
      %v1156 = vsel %vm1144, %v1123, %v889
      %v1158 = vsel %vm1144, %v1125, %v891
      %v1160 = vsel %vm1144, %v1127, %v893
      %v1162 = vsel %vm1144, %v1129, %v895
      %v1164 = vsel %vm1144, %v1131, %v897
      %v1166 = vsel %vm1144, %v1133, %v899
      %v1168 = vsel %vm1144, %v1135, %v901
      %v1170 = vsel %vm1144, %v1137, %v903
      %v1172 = vsel %vm1144, %v1139, %v905
      %v1174 = vsel %vm1144, %v1141, %v907
      %v1176 = vsel %vm1144, %v1143, %v909
      %vm1177 = vcmask 523264
      %v1179 = vsel %vm1177, %v1146, %v915
      %v1181 = vsel %vm1177, %v1148, %v917
      %v1183 = vsel %vm1177, %v1150, %v919
      %v1185 = vsel %vm1177, %v1152, %v921
      %v1187 = vsel %vm1177, %v1154, %v923
      %v1189 = vsel %vm1177, %v1156, %v925
      %v1191 = vsel %vm1177, %v1158, %v927
      %v1193 = vsel %vm1177, %v1160, %v929
      %v1195 = vsel %vm1177, %v1162, %v931
      %v1197 = vsel %vm1177, %v1164, %v933
      %v1199 = vsel %vm1177, %v1166, %v935
      %v1201 = vsel %vm1177, %v1168, %v937
      %v1203 = vsel %vm1177, %v1170, %v939
      %v1205 = vsel %vm1177, %v1172, %v941
      %v1207 = vsel %vm1177, %v1174, %v943
      %v1209 = vsel %vm1177, %v1176, %v945
      %v1210 = vld [vmem:[%s2] sm:$0xf]
      %v1211 = vld [vmem:[%s2 + $0x4] sm:$0xf]
      %v1212 = vld [vmem:[%s2 + $0x8] sm:$0xf]
      %v1213 = vld [vmem:[%s2 + $0xc] sm:$0xf]
      %v1214 = vld [vmem:[%s2 + $0x10] sm:$0xf]
      %v1215 = vld [vmem:[%s2 + $0x14] sm:$0xf]
      %v1216 = vld [vmem:[%s2 + $0x18] sm:$0xf]
      %v1217 = vld [vmem:[%s2 + $0x1c] sm:$0xf]
      %v1218 = vld [vmem:[%s2 + $0x20] sm:$0xf]
      %v1228 = vunpack.c.l.b16 %v1210
      %v1229 = vunpack.c.l.b16 %v1211
      %v1230 = vunpack.c.l.b16 %v1212
      %v1231 = vunpack.c.l.b16 %v1213
      %v1232 = vunpack.c.l.b16 %v1214
      %v1233 = vunpack.c.l.b16 %v1215
      %v1234 = vunpack.c.l.b16 %v1216
      %v1235 = vunpack.c.l.b16 %v1217
      %v1236 = vunpack.c.l.b16 %v1218
      %v1237 = vpack.c.b16 %v1229, %v1228
      %v1238 = vpack.c.b16 %v1231, %v1230
      %v1239 = vpack.c.b16 %v1233, %v1232
      %v1240 = vpack.c.b16 %v1235, %v1234
      %v1241 = vpack.c.b16 %v1236, %v1236
      %vm1246 = vcmask 588800
      %v1247 = vsel %vm1246, %v1179, 0
      %v1249 = vsel %vm1246, %v1181, 0
      %v1251 = vsel %vm1246, %v1183, 0
      %v1253 = vsel %vm1246, %v1185, 0
      %v1255 = vsel %vm1246, %v1187, 0
      %v1257 = vsel %vm1246, %v1189, 0
      %v1259 = vsel %vm1246, %v1191, 0
      %v1261 = vsel %vm1246, %v1193, 0
      %v1263 = vsel %vm1246, %v1195, 0
      %v1265 = vsel %vm1246, %v1197, 0
      %v1267 = vsel %vm1246, %v1199, 0
      %v1269 = vsel %vm1246, %v1201, 0
      %v1271 = vsel %vm1246, %v1203, 0
      %v1273 = vsel %vm1246, %v1205, 0
      %v1275 = vsel %vm1246, %v1207, 0
      %v1277 = vsel %vm1246, %v1209, 0
      %vm1279 = vcmask 1043456
      %v1281 = vsel %vm1279, %v1241, 0
      %1283 = vmatprep.subr.bf16.mxu0 0
      %1284 = vmatpush1.bf16.msra.mxu0 %v1237
      %1285 = vmatprep.subr.bf16.mxu0 0
      %1286 = vmatpush1.bf16.msra.mxu0 %v1238
      %1287 = vmatprep.subr.bf16.mxu0 0
      %1288 = vmatpush1.bf16.msra.mxu0 %v1239
      %1289 = vmatprep.subr.bf16.mxu0 0
      %1290 = vmatpush1.bf16.msra.mxu0 %v1240
      %1291 = vmatprep.subr.bf16.mxu0 0
      %1292 = vmatpush1.bf16.msra.mxu0 %v1281
      %1293 = vmatprep.subr.bf16.mxu0 0
      %1294 = vmatpush1.bf16.msra.mxu0 0
      %1295 = vmatprep.subr.bf16.mxu0 0
      %1296 = vmatpush1.bf16.msra.mxu0 0
      %1297 = vmatprep.subr.bf16.mxu0 0
      %1298 = vmatpush1.bf16.msra.mxu0 0
      %1299 = vmatprep.subr.bf16.mxu0 0
      %1300 = vmatpush1.bf16.msra.mxu0 0
      %1301 = vmatprep.subr.bf16.mxu0 0
      %1302 = vmatpush1.bf16.msra.mxu0 0
      %1303 = vmatprep.subr.bf16.mxu0 0
      %1304 = vmatpush1.bf16.msra.mxu0 0
      %1305 = vmatprep.subr.bf16.mxu0 0
      %1306 = vmatpush1.bf16.msra.mxu0 0
      %1307 = vmatprep.subr.bf16.mxu0 0
      %1308 = vmatpush1.bf16.msra.mxu0 0
      %1309 = vmatprep.subr.bf16.mxu0 0
      %1310 = vmatpush1.bf16.msra.mxu0 0
      %1311 = vmatprep.subr.bf16.mxu0 0
      %1312 = vmatpush1.bf16.msra.mxu0 0
      %1313 = vmatprep.subr.bf16.mxu0 0
      %1314 = vmatpush1.bf16.msra.mxu0 0
      %1315 = vmatprep.mubr.bf16.mxu0 0
      %1316 = vmatmul.mubr.bf16.gmra.mrb[0].mxu0 %v1247
      %v1317 = vpop.f32.mrb[0].mxu0
      %v1318 = vadd.f32 0.0, %v1317
      %v1319 = vpop.f32.mrb[0].mxu0
      %v1320 = vpop.f32.mrb[0].mxu0
      %v1321 = vadd.f32 0.0, %v1320
      %v1322 = vpop.f32.mrb[0].mxu0
      %1323 = vmatprep.mubr.bf16.mxu0 0
      %1324 = vmatmul.mubr.bf16.gmra.mrb[0].mxu0 %v1249
      %v1325 = vpop.f32.mrb[0].mxu0
      %v1326 = vadd.f32 0.0, %v1325
      %v1327 = vpop.f32.mrb[0].mxu0
      %v1328 = vpop.f32.mrb[0].mxu0
      %v1329 = vadd.f32 0.0, %v1328
      %v1330 = vpop.f32.mrb[0].mxu0
      %1331 = vmatprep.mubr.bf16.mxu0 0
      %1332 = vmatmul.mubr.bf16.gmra.mrb[0].mxu0 %v1251
      %v1333 = vpop.f32.mrb[0].mxu0
      %v1334 = vadd.f32 0.0, %v1333
      %v1335 = vpop.f32.mrb[0].mxu0
      %v1336 = vpop.f32.mrb[0].mxu0
      %v1337 = vadd.f32 0.0, %v1336
      %v1338 = vpop.f32.mrb[0].mxu0
      %1339 = vmatprep.mubr.bf16.mxu0 0
      %1340 = vmatmul.mubr.bf16.gmra.mrb[0].mxu0 %v1253
      %v1341 = vpop.f32.mrb[0].mxu0
      %v1342 = vadd.f32 0.0, %v1341
      %v1343 = vpop.f32.mrb[0].mxu0
      %v1344 = vpop.f32.mrb[0].mxu0
      %v1345 = vadd.f32 0.0, %v1344
      %v1346 = vpop.f32.mrb[0].mxu0
      %1347 = vmatprep.mubr.bf16.mxu0 0
      %1348 = vmatmul.mubr.bf16.gmra.mrb[0].mxu0 %v1255
      %v1349 = vpop.f32.mrb[0].mxu0
      %v1350 = vadd.f32 0.0, %v1349
      %v1351 = vpop.f32.mrb[0].mxu0
      %v1352 = vpop.f32.mrb[0].mxu0
      %v1353 = vadd.f32 0.0, %v1352
      %v1354 = vpop.f32.mrb[0].mxu0
      %1355 = vmatprep.mubr.bf16.mxu0 0
      %1356 = vmatmul.mubr.bf16.gmra.mrb[0].mxu0 %v1257
      %v1357 = vpop.f32.mrb[0].mxu0
      %v1358 = vadd.f32 0.0, %v1357
      %v1359 = vpop.f32.mrb[0].mxu0
      %v1360 = vpop.f32.mrb[0].mxu0
      %v1361 = vadd.f32 0.0, %v1360
      %v1362 = vpop.f32.mrb[0].mxu0
      %1363 = vmatprep.mubr.bf16.mxu0 0
      %1364 = vmatmul.mubr.bf16.gmra.mrb[0].mxu0 %v1259
      %v1365 = vpop.f32.mrb[0].mxu0
      %v1366 = vadd.f32 0.0, %v1365
      %v1367 = vpop.f32.mrb[0].mxu0
      %v1368 = vpop.f32.mrb[0].mxu0
      %v1369 = vadd.f32 0.0, %v1368
      %v1370 = vpop.f32.mrb[0].mxu0
      %1371 = vmatprep.mubr.bf16.mxu0 0
      %1372 = vmatmul.mubr.bf16.gmra.mrb[0].mxu0 %v1261
      %v1373 = vpop.f32.mrb[0].mxu0
      %v1374 = vadd.f32 0.0, %v1373
      %v1375 = vpop.f32.mrb[0].mxu0
      %v1376 = vpop.f32.mrb[0].mxu0
      %v1377 = vadd.f32 0.0, %v1376
      %v1378 = vpop.f32.mrb[0].mxu0
      %1379 = vmatprep.mubr.bf16.mxu0 0
      %1380 = vmatmul.mubr.bf16.gmra.mrb[0].mxu0 %v1263
      %v1381 = vpop.f32.mrb[0].mxu0
      %v1382 = vadd.f32 0.0, %v1381
      %v1383 = vpop.f32.mrb[0].mxu0
      %v1384 = vpop.f32.mrb[0].mxu0
      %v1385 = vadd.f32 0.0, %v1384
      %v1386 = vpop.f32.mrb[0].mxu0
      %1387 = vmatprep.mubr.bf16.mxu0 0
      %1388 = vmatmul.mubr.bf16.gmra.mrb[0].mxu0 %v1265
      %v1389 = vpop.f32.mrb[0].mxu0
      %v1390 = vadd.f32 0.0, %v1389
      %v1391 = vpop.f32.mrb[0].mxu0
      %v1392 = vpop.f32.mrb[0].mxu0
      %v1393 = vadd.f32 0.0, %v1392
      %v1394 = vpop.f32.mrb[0].mxu0
      %1395 = vmatprep.mubr.bf16.mxu0 0
      %1396 = vmatmul.mubr.bf16.gmra.mrb[0].mxu0 %v1267
      %v1397 = vpop.f32.mrb[0].mxu0
      %v1398 = vadd.f32 0.0, %v1397
      %v1399 = vpop.f32.mrb[0].mxu0
      %v1400 = vpop.f32.mrb[0].mxu0
      %v1401 = vadd.f32 0.0, %v1400
      %v1402 = vpop.f32.mrb[0].mxu0
      %1403 = vmatprep.mubr.bf16.mxu0 0
      %1404 = vmatmul.mubr.bf16.gmra.mrb[0].mxu0 %v1269
      %v1405 = vpop.f32.mrb[0].mxu0
      %v1406 = vadd.f32 0.0, %v1405
      %v1407 = vpop.f32.mrb[0].mxu0
      %v1408 = vpop.f32.mrb[0].mxu0
      %v1409 = vadd.f32 0.0, %v1408
      %v1410 = vpop.f32.mrb[0].mxu0
      %1411 = vmatprep.mubr.bf16.mxu0 0
      %1412 = vmatmul.mubr.bf16.gmra.mrb[0].mxu0 %v1271
      %v1413 = vpop.f32.mrb[0].mxu0
      %v1414 = vadd.f32 0.0, %v1413
      %v1415 = vpop.f32.mrb[0].mxu0
      %v1416 = vpop.f32.mrb[0].mxu0
      %v1417 = vadd.f32 0.0, %v1416
      %v1418 = vpop.f32.mrb[0].mxu0
      %1419 = vmatprep.mubr.bf16.mxu0 0
      %1420 = vmatmul.mubr.bf16.gmra.mrb[0].mxu0 %v1273
      %v1421 = vpop.f32.mrb[0].mxu0
      %v1422 = vadd.f32 0.0, %v1421
      %v1423 = vpop.f32.mrb[0].mxu0
      %v1424 = vpop.f32.mrb[0].mxu0
      %v1425 = vadd.f32 0.0, %v1424
      %v1426 = vpop.f32.mrb[0].mxu0
      %1427 = vmatprep.mubr.bf16.mxu0 0
      %1428 = vmatmul.mubr.bf16.gmra.mrb[0].mxu0 %v1275
      %v1429 = vpop.f32.mrb[0].mxu0
      %v1430 = vadd.f32 0.0, %v1429
      %v1431 = vpop.f32.mrb[0].mxu0
      %v1432 = vpop.f32.mrb[0].mxu0
      %v1433 = vadd.f32 0.0, %v1432
      %v1434 = vpop.f32.mrb[0].mxu0
      %1435 = vmatprep.mubr.bf16.mxu0 0
      %1436 = vmatmul.mubr.bf16.gmra.mrb[0].mxu0 %v1277
      %v1437 = vpop.f32.mrb[0].mxu0
      %v1438 = vadd.f32 0.0, %v1437
      %v1439 = vpop.f32.mrb[0].mxu0
      %v1440 = vpop.f32.mrb[0].mxu0
      %v1441 = vadd.f32 0.0, %v1440
      %v1442 = vpop.f32.mrb[0].mxu0
      %1443 = vdwg.mxu0
      %1444 = vst.msk [vmem:[%s289] sm:$0xff] %vm946, %v1318
      %1445 = vst.msk [vmem:[%s289 + $0x8] sm:$0xff] %vm946, %v1321
      %1446 = vst.msk [vmem:[%s289 + $0x10] sm:$0xff] %vm946, %v1326
      %1447 = vst.msk [vmem:[%s289 + $0x18] sm:$0xff] %vm946, %v1329
      %1448 = vst.msk [vmem:[%s289 + $0x20] sm:$0xff] %vm946, %v1334
      %1449 = vst.msk [vmem:[%s289 + $0x28] sm:$0xff] %vm946, %v1337
      %1450 = vst.msk [vmem:[%s289 + $0x30] sm:$0xff] %vm946, %v1342
      %1451 = vst.msk [vmem:[%s289 + $0x38] sm:$0xff] %vm946, %v1345
      %1452 = vst.msk [vmem:[%s289 + $0x40] sm:$0xff] %vm946, %v1350
      %1453 = vst.msk [vmem:[%s289 + $0x48] sm:$0xff] %vm946, %v1353
      %1454 = vst.msk [vmem:[%s289 + $0x50] sm:$0xff] %vm946, %v1358
      %1455 = vst.msk [vmem:[%s289 + $0x58] sm:$0xff] %vm946, %v1361
      %1456 = vst.msk [vmem:[%s289 + $0x60] sm:$0xff] %vm946, %v1366
      %1457 = vst.msk [vmem:[%s289 + $0x68] sm:$0xff] %vm946, %v1369
      %1458 = vst.msk [vmem:[%s289 + $0x70] sm:$0xff] %vm946, %v1374
      %1459 = vst.msk [vmem:[%s289 + $0x78] sm:$0xff] %vm946, %v1377
      %1460 = vst.msk [vmem:[%s289 + $0x80] sm:$0xff] %vm946, %v1382
      %1461 = vst.msk [vmem:[%s289 + $0x88] sm:$0xff] %vm946, %v1385
      %1462 = vst.msk [vmem:[%s289 + $0x90] sm:$0xff] %vm946, %v1390
      %1463 = vst.msk [vmem:[%s289 + $0x98] sm:$0xff] %vm946, %v1393
      %1464 = vst.msk [vmem:[%s289 + $0xa0] sm:$0xff] %vm946, %v1398
      %1465 = vst.msk [vmem:[%s289 + $0xa8] sm:$0xff] %vm946, %v1401
      %1466 = vst.msk [vmem:[%s289 + $0xb0] sm:$0xff] %vm946, %v1406
      %1467 = vst.msk [vmem:[%s289 + $0xb8] sm:$0xff] %vm946, %v1409
      %1468 = vst.msk [vmem:[%s289 + $0xc0] sm:$0xff] %vm946, %v1414
      %1469 = vst.msk [vmem:[%s289 + $0xc8] sm:$0xff] %vm946, %v1417
      %1470 = vst.msk [vmem:[%s289 + $0xd0] sm:$0xff] %vm946, %v1422
      %1471 = vst.msk [vmem:[%s289 + $0xd8] sm:$0xff] %vm946, %v1425
      %1472 = vst.msk [vmem:[%s289 + $0xe0] sm:$0xff] %vm946, %v1430
      %1473 = vst.msk [vmem:[%s289 + $0xe8] sm:$0xff] %vm946, %v1433
      %1474 = vst.msk [vmem:[%s289 + $0xf0] sm:$0xff] %vm946, %v1438
      %1475 = vst.msk [vmem:[%s289 + $0xf8] sm:$0xff] %vm946, %v1441
      %s1476 = smul.u32 32, %s19
      %p1477 = scmp.lt.s32.totalorder %s18, 1
      %s1478 = scalar_select %p1477, %s18, 1
      %p1479 = scmp.lt.s32.totalorder %s1476, 31
      %s1480 = scalar_select %p1479, %s1476, 31
      %s1481 = smul.addr %s1478, 32
      %s1482 = sadd.s32 %s1480, %s1481
      %s1483 = smul.addr %s1482, 8
      %s1484 = scalar_lea.vmem %s3, %s1483
      // Predicated region
      $region33: #{residual_block.2} parent=31 // pred_check
        %p1485 = pneg %p127
      $region34: #{residual_block.2} parent=31 // pred_check_branch
        %1487 = sbr.rel (%p1485) target = $region36
      $region35: #{residual_block.2} parent=31 // pred_region
        %s1488 = smul.u32 32, %s19
      $region36: #{residual_block.2} parent=31 // pred_fallthru
        _
    $region32: #{residual_block.2} parent=5 // pred_fallthru
      _
    %p1489 = scmp.le.s32.totalorder 2, %s9
    // Predicated region
    $region37: #{residual_block.2} parent=5 // pred_check
      %p1490 = pneg %p1489
    $region38: #{residual_block.2} parent=5 // pred_check_branch
      %1492 = sbr.rel (%p1490) target = $region40
    $region39: #{residual_block.2} parent=5 // pred_region
      %s1493 = ssub.s32 %s9, 2
      // Predicated region
      $region41: #{residual_block.2} parent=39 // pred_check
        %p1494 = pneg %p133
      $region42: #{residual_block.2} parent=39 // pred_check_branch
        %1496 = sbr.rel (%p1494) target = $region44
      $region43: #{residual_block.2} parent=39 // pred_region
        %s1497 = smul.u32 32, %s21
        %p1498 = scmp.lt.s32.totalorder %s20, 1
        %s1499 = scalar_select %p1498, %s20, 1
        %p1500 = scmp.lt.s32.totalorder %s1497, 31
        %s1501 = scalar_select %p1500, %s1497, 31
        %s1502 = smul.addr %s1499, 32
        %s1503 = sadd.s32 %s1501, %s1502
        %s1504 = smul.addr %s1503, 8
        %s1505 = scalar_lea.vmem %s3, %s1504
      $region44: #{residual_block.2} parent=39 // pred_fallthru
        _
    $region40: #{residual_block.2} parent=5 // pred_fallthru
      _
  $region6: #{residual_block.2} parent=0 // loop_footer
    %s13 = sadd.s32 1, %s9
  $region7: #{residual_block.2} parent=0 // loop_footer_branch
    %8 = sbr.rel target = $region3
  $region8: #{residual_block.2} parent=0 // loop_exit
    _

</llo_original>
